<compile_context>
chip_gen: v6e
topology: v6e:2x2x1
jax: 0.10.0
libtpu: 0.0.40
codegen_flags: <defaults>
</compile_context>

<pallas_src>
import jax
import jax.numpy as jnp
import numpy as np
from jax.experimental import pallas as pl
from jax.experimental.pallas import tpu as pltpu

KSIZE = 5
PAD = KSIZE - 1                 # ZeroPad1d((4, 0)) -> "causal" left pad
C_IN = 4
C_MID = 180
GROUPS = 4
C_PER_GROUP = C_MID // GROUPS   # 45
MAX_TILE_B = 128                # MXU M-rows per grid step (fits v5e 128-wide MXU)


# --------------------------- fused Pallas kernel -----------------------------

def _group1dcnn_kernel(x_ref, w1_ref, b1_ref, w2_ref, b2_ref, w3t_ref, b3_ref,
                       o_ref):
    """conv1+ReLU -> conv2+ReLU -> flatten+linear+ReLU for a (TILE_B, 4) tile.

    L == 1 specialization: with ZeroPad1d((4,0)) and kernel_size=5, the single
    output position of each conv layer only multiplies the LAST kernel tap by
    real data (taps 0..3 hit zeros), so every layer is one lane-dense matmul:

      x_ref  : (TILE_B, 4)     f32 rows (one sample's 4 channels per row)
      w1_ref : (4, 180)        dense last-tap layer-1 weight (C_in, C_out)
      w2_ref : (180, 180)      dense block-diag last-tap layer-2 weight
      w3t_ref: (180, 180)      W3^T
      b*_ref : (1, 180)        f32 biases
      o_ref  : (TILE_B, 180)   f32 output

    MXU operands are cast to the (possibly bf16) weight dtype; accumulation,
    bias add and ReLU stay f32.
    """
    h1 = jnp.dot(x_ref[...].astype(w1_ref.dtype), w1_ref[...],
                 preferred_element_type=jnp.float32)
    h1 = jnp.maximum(h1 + b1_ref[...], 0.0)                     # (B, 180) f32

    h2 = jnp.dot(h1.astype(w2_ref.dtype), w2_ref[...],
                 preferred_element_type=jnp.float32)
    h2 = jnp.maximum(h2 + b2_ref[...], 0.0)                     # (B, 180) f32

    # layer 3: Flatten(0) of a (180, 1) map is just the 180-wide channel row.
    y = jnp.dot(h2.astype(w3t_ref.dtype), w3t_ref[...],
                preferred_element_type=jnp.float32)
    o_ref[...] = jnp.maximum(y + b3_ref[...], 0.0)


# --------------------------- pallas_call wrapper ------------------------------

def _forward_call(x_rows, w1, b1, w2, b2, w3t, b3, *, tile_b):
    b_pad = x_rows.shape[0]
    grid = (b_pad // tile_b,)

    flops = int(2 * b_pad * (C_IN * C_MID + 2 * C_MID * C_MID)   # 3 matmuls
                + 3 * b_pad * C_MID)                             # bias + relu
    bytes_accessed = int(
        x_rows.size * x_rows.dtype.itemsize
        + sum(int(np.prod(a.shape)) * a.dtype.itemsize
              for a in (w1, b1, w2, b2, w3t, b3))                # weights once
        + b_pad * C_MID * 4)                                     # output

    const = lambda b: (0, 0)   # weights/biases: VMEM-resident across the grid
    return pl.pallas_call(
        _group1dcnn_kernel,
        out_shape=jax.ShapeDtypeStruct((b_pad, C_MID), jnp.float32),
        grid_spec=pltpu.PrefetchScalarGridSpec(
            num_scalar_prefetch=0,
            grid=grid,
            in_specs=[
                pl.BlockSpec((tile_b, C_IN), lambda b: (b, 0)),   # x tile
                pl.BlockSpec((C_IN, C_MID), const),               # w1 (last tap)
                pl.BlockSpec((1, C_MID), const),                  # b1
                pl.BlockSpec((C_MID, C_MID), const),              # w2 (last tap)
                pl.BlockSpec((1, C_MID), const),                  # b2
                pl.BlockSpec((C_MID, C_MID), const),              # w3^T
                pl.BlockSpec((1, C_MID), const),                  # b3
            ],
            out_specs=pl.BlockSpec((tile_b, C_MID), lambda b: (b, 0)),
        ),
        compiler_params=pltpu.CompilerParams(
            dimension_semantics=("parallel",)),                   # v7x: 2 TCs
        cost_estimate=pl.CostEstimate(flops=flops, transcendentals=0,
                                      bytes_accessed=bytes_accessed),
    )(x_rows, w1, b1, w2, b2, w3t, b3)


@jax.jit
def group1dcnn_forward_batched(inference_params, x_batch):
    """B independent module calls at once.

    x_batch: (B, 4, 1) float32 — B unbatched PyTorch-layout (C, L=1) inputs.
    Returns (B, 180).
    """
    B = x_batch.shape[0]
    assert x_batch.shape[1:] == (C_IN, 1), (
        "Group1DCNN layer3 (Flatten(0)+Linear(180,180)) requires unbatched "
        "(4, L) inputs with L == 1")
    x_rows = x_batch.reshape(B, C_IN).astype(jnp.float32)        # (B, 4) lane-dense rows

    # Pad batch to a sublane multiple; tile up to MAX_TILE_B rows per grid step.
    b_pad = max(8, -(-B // 8) * 8)
    if b_pad <= MAX_TILE_B:
        tile_b = b_pad
    else:
        b_pad = -(-b_pad // MAX_TILE_B) * MAX_TILE_B
        tile_b = MAX_TILE_B
    if b_pad != B:
        x_rows = jnp.pad(x_rows, ((0, b_pad - B), (0, 0)))

    y = _forward_call(
        x_rows,
        inference_params["w1"], inference_params["b1"],
        inference_params["w2"], inference_params["b2"],
        inference_params["w3t"], inference_params["b3"],
        tile_b=tile_b)
    return y[:B]


@jax.jit
def group1dcnn_forward(inference_params, x):
    """Single module call. x: (4, 1) float32 PyTorch layout. Returns (180,)."""
    assert x.shape == (C_IN, 1), "expected unbatched (4, 1) input (L == 1)"
    return group1dcnn_forward_batched(inference_params, x[None])[0]


# --------------------------- parameters (one-time glue) -----------------------

def init_params(key):
    """Raw parameters in PyTorch layout / init."""
    ks = jax.random.split(key, 6)

    def u(k, shape, fan_in):
        bound = 1.0 / float(np.sqrt(fan_in))
        return jax.random.uniform(k, shape, jnp.float32, -bound, bound)

    w1 = u(ks[0], (C_MID, 1, KSIZE), 1 * KSIZE)                      # Conv1d(4,180,g=4,k=5)
    b1 = u(ks[1], (C_MID,), 1 * KSIZE)
    w2 = u(ks[2], (C_MID, C_PER_GROUP, KSIZE), C_PER_GROUP * KSIZE)  # Conv1d(180,180,g=4,k=5)
    b2 = u(ks[3], (C_MID,), C_PER_GROUP * KSIZE)
    w3 = u(ks[4], (C_MID, C_MID), C_MID)                             # Linear(180,180)
    b3 = u(ks[5], (C_MID,), C_MID)
    return dict(w1=w1, b1=b1, w2=w2, b2=b2, w3=w3, b3=b3)


def prepare_inference_params(params, *, compute_dtype=jnp.float32):
    """One-time parameter glue, hoisted out of the forward pass.

    L == 1 specialization: only the LAST kernel tap of each grouped conv can
    touch non-pad data, so only that tap is kept.  Grouped structure is
    densified (block-diagonal zeros) so each layer is a single lane-dense
    (C_in, C_out) matmul; W3 is transposed; biases become (1, 180) f32 rows;
    MXU operands (weights) are optionally cast to bf16 (accumulation stays
    f32 in the kernel).
    """
    w1, w2, w3 = params["w1"], params["w2"], params["w3"]

    # layer 1, last tap: output channel c (group g = c // 45) reads input channel g.
    g_of_out = jnp.arange(C_MID) // C_PER_GROUP                       # (180,)
    onehot = jax.nn.one_hot(g_of_out, C_IN, dtype=jnp.float32)        # (180, 4)
    w1_last = (w1[:, 0, KSIZE - 1][:, None] * onehot).T               # (4, 180) = (C_in, C_out)

    # layer 2, last tap: 45x45 block-diagonal dense (C_in, C_out) = (180, 180).
    # Kept dense: per-group 45-wide matmuls would pad to 128 lanes anyway, and
    # with the batched grid the weight is loaded once and stays VMEM-resident.
    w2_last = w2[:, :, KSIZE - 1]                                     # (out, in_per_group)
    w2_dense = jnp.zeros((C_MID, C_MID), jnp.float32)                 # (in, out)
    for g in range(GROUPS):
        lo, hi = g * C_PER_GROUP, (g + 1) * C_PER_GROUP
        w2_dense = w2_dense.at[lo:hi, lo:hi].set(w2_last[lo:hi, :].T)

    cd = compute_dtype
    return dict(
        w1=w1_last.astype(cd),
        w2=w2_dense.astype(cd),
        w3t=jnp.transpose(w3).astype(cd),                             # (180, 180) = W3^T
        b1=params["b1"].reshape(1, C_MID).astype(jnp.float32),
        b2=params["b2"].reshape(1, C_MID).astype(jnp.float32),
        b3=params["b3"].reshape(1, C_MID).astype(jnp.float32),
    )


# --------------------------- pure-JAX reference --------------------------------

def group1dcnn_reference_batched(params, x_batch):
    """Faithful PyTorch semantics (pad + grouped conv + relu x2, flatten, linear)."""
    def gconv_relu(xi, w, b):
        xp = jnp.pad(xi, ((0, 0), (0, 0), (PAD, 0)))
        y = jax.lax.conv_general_dilated(
            xp, w, window_strides=(1,), padding="VALID",
            dimension_numbers=("NCH", "OIH", "NCH"),
            feature_group_count=GROUPS)
        return jax.nn.relu(y + b[None, :, None])

    xb = x_batch.astype(jnp.float32)                                  # (B, 4, 1)
    h1 = gconv_relu(xb, params["w1"], params["b1"])                   # (B, 180, 1)
    h2 = gconv_relu(h1, params["w2"], params["b2"])                   # (B, 180, 1)
    flat = h2.reshape(h2.shape[0], -1)                                # (B, 180): Flatten(0) per sample
    return jax.nn.relu(flat @ params["w3"].T + params["b3"][None])


# --------------------------- main ----------------------------------------------

if __name__ == "__main__":
    key = jax.random.PRNGKey(0)
    pkey, xkey = jax.random.split(key)
    params = init_params(pkey)

    # 16 independent unbatched (C=4, L=1) samples; L=1 is forced by layer3.
    B = 16
    x_batch = jax.random.normal(xkey, (B, C_IN, 1), dtype=jnp.float32)
    y_ref = group1dcnn_reference_batched(params, x_batch)             # (16, 180)

    # f32 fused Pallas kernel (exact path), batched over the MXU M dimension.
    inf_f32 = prepare_inference_params(params, compute_dtype=jnp.float32)
    y = jax.block_until_ready(group1dcnn_forward_batched(inf_f32, x_batch))
    np.testing.assert_allclose(np.asarray(y), np.asarray(y_ref), rtol=1e-4, atol=1e-4)

    # Single-sample forward (the original module's call signature).
    y1 = jax.block_until_ready(group1dcnn_forward(inf_f32, x_batch[0]))
    np.testing.assert_allclose(np.asarray(y1), np.asarray(y_ref[0]), rtol=1e-4, atol=1e-4)

    # bf16-weight/operand variant: halves the dominant per-call weight DMA
    # (main win on v5e); f32 accumulation/bias/ReLU.  Note: activations are
    # cast to bf16 at the three dot boundaries, so quantization error compounds
    # -> looser tolerance here by design; use the f32 path when accuracy matters.
    inf_bf16 = prepare_inference_params(params, compute_dtype=jnp.bfloat16)
    y_bf16 = jax.block_until_ready(group1dcnn_forward_batched(inf_bf16, x_batch))
    np.testing.assert_allclose(np.asarray(y_bf16), np.asarray(y_ref), rtol=1e-1, atol=1e-1)

    print("KERNEL_OK")
</pallas_src>

<mosaic_0001>
module attributes {stable_mosaic.version = 11 : i64} {
  func.func @_group1dcnn_kernel(%arg0: i32, %arg1: memref<16x4xf32, #tpu.memory_space<vmem>>, %arg2: memref<4x180xf32, #tpu.memory_space<vmem>>, %arg3: memref<1x180xf32, #tpu.memory_space<vmem>>, %arg4: memref<180x180xf32, #tpu.memory_space<vmem>>, %arg5: memref<1x180xf32, #tpu.memory_space<vmem>>, %arg6: memref<180x180xf32, #tpu.memory_space<vmem>>, %arg7: memref<1x180xf32, #tpu.memory_space<vmem>>, %arg8: memref<16x180xf32, #tpu.memory_space<vmem>>) attributes {dimension_semantics = [#tpu.dimension_semantics<parallel>], iteration_bounds = array<i64: 1>, scalar_prefetch = 0 : i64, scratch_operands = 0 : i64, tpu.core_type = #tpu.core_type<tc>, window_params = [{transform_indices = @transform_0, window_bounds = array<i64: 16, 4>}, {pipeline_mode = #tpu.pipeline_mode<synchronous>, transform_indices = @transform_1, window_bounds = array<i64: 4, 180>}, {pipeline_mode = #tpu.pipeline_mode<synchronous>, transform_indices = @transform_2, window_bounds = array<i64: 1, 180>}, {pipeline_mode = #tpu.pipeline_mode<synchronous>, transform_indices = @transform_3, window_bounds = array<i64: 180, 180>}, {pipeline_mode = #tpu.pipeline_mode<synchronous>, transform_indices = @transform_4, window_bounds = array<i64: 1, 180>}, {pipeline_mode = #tpu.pipeline_mode<synchronous>, transform_indices = @transform_5, window_bounds = array<i64: 180, 180>}, {pipeline_mode = #tpu.pipeline_mode<synchronous>, transform_indices = @transform_6, window_bounds = array<i64: 1, 180>}, {transform_indices = @transform_7, window_bounds = array<i64: 16, 180>}]} {
    %c0 = arith.constant 0 : index
    %c0_0 = arith.constant 0 : index
    %0 = vector.load %arg1[%c0, %c0_0] : memref<16x4xf32, #tpu.memory_space<vmem>>, vector<16x4xf32>
    %c0_1 = arith.constant 0 : index
    %c0_2 = arith.constant 0 : index
    %1 = vector.load %arg2[%c0_1, %c0_2] : memref<4x180xf32, #tpu.memory_space<vmem>>, vector<4x180xf32>
    %cst = arith.constant dense<0.000000e+00> : vector<16x180xf32>
    %2 = tpu.matmul %0, %1, %cst {dimension_numbers = #tpu.dot_dimension_numbers<[1], [0], [0], [1], [0, 0, 1, 1], [], []>} : vector<16x4xf32>, vector<4x180xf32>, vector<16x180xf32> -> vector<16x180xf32>
    %c0_3 = arith.constant 0 : index
    %c0_4 = arith.constant 0 : index
    %3 = vector.load %arg3[%c0_3, %c0_4] : memref<1x180xf32, #tpu.memory_space<vmem>>, vector<1x180xf32>
    %4 = vector.broadcast %3 : vector<1x180xf32> to vector<16x180xf32>
    %5 = arith.addf %2, %4 : vector<16x180xf32>
    %cst_5 = arith.constant 0.000000e+00 : f32
    %6 = vector.broadcast %cst_5 : f32 to vector<16x180xf32>
    %7 = arith.maximumf %5, %6 : vector<16x180xf32>
    %c0_6 = arith.constant 0 : index
    %c0_7 = arith.constant 0 : index
    %8 = vector.load %arg4[%c0_6, %c0_7] : memref<180x180xf32, #tpu.memory_space<vmem>>, vector<180x180xf32>
    %cst_8 = arith.constant dense<0.000000e+00> : vector<16x180xf32>
    %9 = tpu.matmul %7, %8, %cst_8 {dimension_numbers = #tpu.dot_dimension_numbers<[1], [0], [0], [1], [0, 0, 1, 1], [], []>} : vector<16x180xf32>, vector<180x180xf32>, vector<16x180xf32> -> vector<16x180xf32>
    %c0_9 = arith.constant 0 : index
    %c0_10 = arith.constant 0 : index
    %10 = vector.load %arg5[%c0_9, %c0_10] : memref<1x180xf32, #tpu.memory_space<vmem>>, vector<1x180xf32>
    %11 = vector.broadcast %10 : vector<1x180xf32> to vector<16x180xf32>
    %12 = arith.addf %9, %11 : vector<16x180xf32>
    %cst_11 = arith.constant 0.000000e+00 : f32
    %13 = vector.broadcast %cst_11 : f32 to vector<16x180xf32>
    %14 = arith.maximumf %12, %13 : vector<16x180xf32>
    %c0_12 = arith.constant 0 : index
    %c0_13 = arith.constant 0 : index
    %15 = vector.load %arg6[%c0_12, %c0_13] : memref<180x180xf32, #tpu.memory_space<vmem>>, vector<180x180xf32>
    %cst_14 = arith.constant dense<0.000000e+00> : vector<16x180xf32>
    %16 = tpu.matmul %14, %15, %cst_14 {dimension_numbers = #tpu.dot_dimension_numbers<[1], [0], [0], [1], [0, 0, 1, 1], [], []>} : vector<16x180xf32>, vector<180x180xf32>, vector<16x180xf32> -> vector<16x180xf32>
    %c0_15 = arith.constant 0 : index
    %c0_16 = arith.constant 0 : index
    %17 = vector.load %arg7[%c0_15, %c0_16] : memref<1x180xf32, #tpu.memory_space<vmem>>, vector<1x180xf32>
    %18 = vector.broadcast %17 : vector<1x180xf32> to vector<16x180xf32>
    %19 = arith.addf %16, %18 : vector<16x180xf32>
    %cst_17 = arith.constant 0.000000e+00 : f32
    %20 = vector.broadcast %cst_17 : f32 to vector<16x180xf32>
    %21 = arith.maximumf %19, %20 : vector<16x180xf32>
    %c0_18 = arith.constant 0 : index
    %c0_19 = arith.constant 0 : index
    %22 = vector.load %arg8[%c0_18, %c0_19] : memref<16x180xf32, #tpu.memory_space<vmem>>, vector<16x180xf32>
    tpu.vector_store %arg8[%c0_18, %c0_19], %21 {strides = array<i32>} : memref<16x180xf32, #tpu.memory_space<vmem>>, vector<16x180xf32>,
    return
  }
  func.func @transform_0(%arg0: i32) -> (i32, i32) {
    %c0_i32 = arith.constant 0 : i32
    %c0_i32_0 = arith.constant 0 : i32
    return %arg0, %c0_i32 : i32, i32
  }
  func.func @transform_1(%arg0: i32) -> (i32, i32) {
    %c0_i32 = arith.constant 0 : i32
    %c0_i32_0 = arith.constant 0 : i32
    %c0_i32_1 = arith.constant 0 : i32
    return %c0_i32, %c0_i32_0 : i32, i32
  }
  func.func @transform_2(%arg0: i32) -> (i32, i32) {
    %c0_i32 = arith.constant 0 : i32
    %c0_i32_0 = arith.constant 0 : i32
    %c0_i32_1 = arith.constant 0 : i32
    return %c0_i32, %c0_i32_0 : i32, i32
  }
  func.func @transform_3(%arg0: i32) -> (i32, i32) {
    %c0_i32 = arith.constant 0 : i32
    %c0_i32_0 = arith.constant 0 : i32
    %c0_i32_1 = arith.constant 0 : i32
    return %c0_i32, %c0_i32_0 : i32, i32
  }
  func.func @transform_4(%arg0: i32) -> (i32, i32) {
    %c0_i32 = arith.constant 0 : i32
    %c0_i32_0 = arith.constant 0 : i32
    %c0_i32_1 = arith.constant 0 : i32
    return %c0_i32, %c0_i32_0 : i32, i32
  }
  func.func @transform_5(%arg0: i32) -> (i32, i32) {
    %c0_i32 = arith.constant 0 : i32
    %c0_i32_0 = arith.constant 0 : i32
    %c0_i32_1 = arith.constant 0 : i32
    return %c0_i32, %c0_i32_0 : i32, i32
  }
  func.func @transform_6(%arg0: i32) -> (i32, i32) {
    %c0_i32 = arith.constant 0 : i32
    %c0_i32_0 = arith.constant 0 : i32
    %c0_i32_1 = arith.constant 0 : i32
    return %c0_i32, %c0_i32_0 : i32, i32
  }
  func.func @transform_7(%arg0: i32) -> (i32, i32) {
    %c0_i32 = arith.constant 0 : i32
    %c0_i32_0 = arith.constant 0 : i32
    return %arg0, %c0_i32 : i32, i32
  }
}

</mosaic_0001>

<llo_original>
// kernel: group1dcnn_forward_batched.1
$region0: #{group1dcnn_forward_batched.1}
  #allocation0 [shape = 'u32[]', space=smem, size = 0x4, offset = 0x4, fixed_abs, tag = 'smem constant byte address 0x4 - core index']
  #allocation1 [shape = 'u32[144,128]{1,0:T(1,128)}', space=vmem, size = 0x12000, scoped, tag = 'internal scratch']
  %s0 = inlined_call_operand.vmem [shape: f32[16,4], index: 0, kind: input, shape index: {}]
  %s1 = inlined_call_operand.vmem [shape: f32[4,180], index: 1, kind: input, shape index: {}]
  %s2 = inlined_call_operand.vmem [shape: f32[1,180], index: 2, kind: input, shape index: {}]
  %s3 = inlined_call_operand.hbm [shape: f32[180,180], index: 3, kind: input, shape index: {}]
  %s4 = inlined_call_operand.vmem [shape: f32[1,180], index: 4, kind: input, shape index: {}]
  %s5 = inlined_call_operand.hbm [shape: f32[180,180], index: 5, kind: input, shape index: {}]
  %s6 = inlined_call_operand.vmem [shape: f32[1,180], index: 6, kind: input, shape index: {}]
  %s7 = inlined_call_operand.hbm [shape: f32[16,180], index: 7, kind: output, shape index: {}]
  %s8 = sld [smem:[#allocation0]]
  $region46: #{group1dcnn_forward_batched.1} parent=0
    _
  %s10 = ssub.s32 1, %s8
  %s11 = scalar_select 0, %s10, %s8
  $region1: #{group1dcnn_forward_batched.1} parent=0
    #allocation2 [shape = 'u8[188416]{0}', space=vmem, size = 0x2e000, scoped, tag = 'input window, operand 3, single buffered']
    #allocation3 [shape = 's32[1]{0}', space=sflag, size = 0x4, scoped, tag = 'scoped memory for group1dcnn_forward_batched.1']
    #allocation4 [shape = 's32[1]{0}', space=sflag, size = 0x4, scoped, tag = 'scoped memory for group1dcnn_forward_batched.1']
    #allocation5 [shape = 'u8[188416]{0}', space=vmem, size = 0x2e000, scoped, tag = 'input window, operand 5, single buffered']
    #allocation6 [shape = 's32[1]{0}', space=sflag, size = 0x4, scoped, tag = 'scoped memory for group1dcnn_forward_batched.1']
    #allocation7 [shape = 'u8[16384]{0}', space=vmem, size = 0x4000, scoped, tag = 'output window, operand 0, single buffered']
    %12 = vsyncpa [#allocation3], 0
    %13 = vsyncpa [#allocation6], 0
    %14 = vsyncpa [#allocation4], 0
    // Predicated region
    $region2: #{group1dcnn_forward_batched.1} parent=1 // pred_check
      _
    $region3: #{group1dcnn_forward_batched.1} parent=1 // pred_check_branch
      %16 = sbr.rel (0) target = $region5
    $region4: #{group1dcnn_forward_batched.1} parent=1 // pred_region
      _
    $region5: #{group1dcnn_forward_batched.1} parent=1 // pred_fallthru
      _
    // Predicated region
    $region6: #{group1dcnn_forward_batched.1} parent=1 // pred_check
      _
    $region7: #{group1dcnn_forward_batched.1} parent=1 // pred_check_branch
      %18 = sbr.rel (0) target = $region9
    $region8: #{group1dcnn_forward_batched.1} parent=1 // pred_region
      _
    $region9: #{group1dcnn_forward_batched.1} parent=1 // pred_fallthru
      _
    // Predicated region
    $region10: #{group1dcnn_forward_batched.1} parent=1 // pred_check
      _
    $region11: #{group1dcnn_forward_batched.1} parent=1 // pred_check_branch
      %20 = sbr.rel (0) target = $region13
    $region12: #{group1dcnn_forward_batched.1} parent=1 // pred_region
      _
    $region13: #{group1dcnn_forward_batched.1} parent=1 // pred_fallthru
      _
    // Predicated region
    $region14: #{group1dcnn_forward_batched.1} parent=1 // pred_check
      _
    $region15: #{group1dcnn_forward_batched.1} parent=1 // pred_check_branch
      %22 = sbr.rel (0) target = $region17
    $region16: #{group1dcnn_forward_batched.1} parent=1 // pred_region
      %s24 = ssub.s32 5888, 5888
      %25 = vsyncadd [#allocation3], %s24
      %s26 = sshll.u32 [#allocation2], 4
      %s27 = int_to_ptr.vmem [resolvable:$true] %s26
      %32 = dma.hbm_to_vmem [thread:$0]  %s3, 5888, %s27, [#allocation3], 256, 256, 16
    $region17: #{group1dcnn_forward_batched.1} parent=1 // pred_fallthru
      _
    // Predicated region
    $region18: #{group1dcnn_forward_batched.1} parent=1 // pred_check
      _
    $region19: #{group1dcnn_forward_batched.1} parent=1 // pred_check_branch
      %34 = sbr.rel (0) target = $region21
    $region20: #{group1dcnn_forward_batched.1} parent=1 // pred_region
      _
    $region21: #{group1dcnn_forward_batched.1} parent=1 // pred_fallthru
      _
    // Predicated region
    $region22: #{group1dcnn_forward_batched.1} parent=1 // pred_check
      _
    $region23: #{group1dcnn_forward_batched.1} parent=1 // pred_check_branch
      %36 = sbr.rel (0) target = $region25
    $region24: #{group1dcnn_forward_batched.1} parent=1 // pred_region
      %s38 = ssub.s32 5888, 5888
      %39 = vsyncadd [#allocation6], %s38
      %s40 = sshll.u32 [#allocation5], 4
      %s41 = int_to_ptr.vmem [resolvable:$true] %s40
      %46 = dma.hbm_to_vmem [thread:$0]  %s5, 5888, %s41, [#allocation6], 256, 256, 16
    $region25: #{group1dcnn_forward_batched.1} parent=1 // pred_fallthru
      _
    // Predicated region
    $region26: #{group1dcnn_forward_batched.1} parent=1 // pred_check
      _
    $region27: #{group1dcnn_forward_batched.1} parent=1 // pred_check_branch
      %48 = sbr.rel (0) target = $region29
    $region28: #{group1dcnn_forward_batched.1} parent=1 // pred_region
      _
    $region29: #{group1dcnn_forward_batched.1} parent=1 // pred_fallthru
      _
    // Predicated region
    $region30: #{group1dcnn_forward_batched.1} parent=1 // pred_check
      _
    $region31: #{group1dcnn_forward_batched.1} parent=1 // pred_check_branch
      %50 = sbr.rel (0) target = $region33
    $region32: #{group1dcnn_forward_batched.1} parent=1 // pred_region
      %51 = dma.done [#allocation3], 5888
    $region33: #{group1dcnn_forward_batched.1} parent=1 // pred_fallthru
      _
    // Predicated region
    $region34: #{group1dcnn_forward_batched.1} parent=1 // pred_check
      _
    $region35: #{group1dcnn_forward_batched.1} parent=1 // pred_check_branch
      %53 = sbr.rel (0) target = $region37
    $region36: #{group1dcnn_forward_batched.1} parent=1 // pred_region
      %54 = dma.done [#allocation6], 5888
    $region37: #{group1dcnn_forward_batched.1} parent=1 // pred_fallthru
      _
    %v55 = vld [vmem:[%s0] sm:$0xff]
    %v56 = vld [vmem:[%s0 + $0x8] sm:$0xff]
    %v57 = vld [vmem:[%s1] sm:$0xff]
    %v58 = vld [vmem:[%s2] sm:$0x3]
    %v60 = vlaneseq
    %v61 = vshrl.u32 %v60, 7
    %v62 = vsub.s32 0, %v61
    %v63 = vrot.slane %v58, %v62
    %v64 = vlaneseq
    %v65 = vshrl.u32 %v64, 7
    %v66 = vsub.s32 1, %v65
    %v67 = vrot.slane %v58, %v66
    %v71 = vcombine.high %v57, %v57
    %vm72 = vcmask 31744
    %v74 = vsel %vm72, %v55, 0
    %v77 = vsel %vm72, %v56, 0
    %vm79 = vcmask 1043456
    %v80 = vsel %vm79, %v57, 0
    %v82 = vsel %vm79, %v71, 0
    %84 = vmatprep.subr.mxu0 0.0
    %85 = vmatpush1.msra.mxu0 0.0
    %86 = vmatprep.subr.mxu0 0.0
    %87 = vmatpush1.msra.mxu0 0.0
    %88 = vmatprep.subr.mxu0 0.0
    %89 = vmatpush1.msra.mxu0 0.0
    %90 = vmatprep.subr.mxu0 0.0
    %91 = vmatpush1.msra.mxu0 0.0
    %92 = vmatprep.subr.mxu0 0.0
    %93 = vmatpush1.msra.mxu0 0.0
    %94 = vmatprep.subr.mxu0 0.0
    %95 = vmatpush1.msra.mxu0 0.0
    %96 = vmatprep.subr.mxu0 0.0
    %97 = vmatpush1.msra.mxu0 0.0
    %98 = vmatprep.subr.mxu0 0.0
    %99 = vmatpush1.msra.mxu0 0.0
    %100 = vmatprep.subr.mxu0 0.0
    %101 = vmatpush1.msra.mxu0 0.0
    %102 = vmatprep.subr.mxu0 0.0
    %103 = vmatpush1.msra.mxu0 0.0
    %104 = vmatprep.subr.mxu0 0.0
    %105 = vmatpush1.msra.mxu0 0.0
    %106 = vmatprep.subr.mxu0 0.0
    %107 = vmatpush1.msra.mxu0 0.0
    %108 = vmatprep.subr.mxu0 0.0
    %109 = vmatpush1.msra.mxu0 0.0
    %110 = vmatprep.subr.mxu0 0.0
    %111 = vmatpush1.msra.mxu0 0.0
    %112 = vmatprep.subr.mxu0 0.0
    %113 = vmatpush1.msra.mxu0 0.0
    %114 = vmatprep.subr.mxu0 %v82
    %115 = vmatpush1.msra.mxu0 %v80
    %116 = vmatprep.subr.mxu0 0.0
    %117 = vmatpush2.msra.mxu0 0.0
    %118 = vmatprep.subr.mxu0 0.0
    %119 = vmatpush2.msra.mxu0 0.0
    %120 = vmatprep.subr.mxu0 0.0
    %121 = vmatpush2.msra.mxu0 0.0
    %122 = vmatprep.subr.mxu0 0.0
    %123 = vmatpush2.msra.mxu0 0.0
    %124 = vmatprep.subr.mxu0 0.0
    %125 = vmatpush2.msra.mxu0 0.0
    %126 = vmatprep.subr.mxu0 0.0
    %127 = vmatpush2.msra.mxu0 0.0
    %128 = vmatprep.subr.mxu0 0.0
    %129 = vmatpush2.msra.mxu0 0.0
    %130 = vmatprep.subr.mxu0 0.0
    %131 = vmatpush2.msra.mxu0 0.0
    %132 = vmatprep.subr.mxu0 0.0
    %133 = vmatpush2.msra.mxu0 0.0
    %134 = vmatprep.subr.mxu0 0.0
    %135 = vmatpush2.msra.mxu0 0.0
    %136 = vmatprep.subr.mxu0 0.0
    %137 = vmatpush2.msra.mxu0 0.0
    %138 = vmatprep.subr.mxu0 0.0
    %139 = vmatpush2.msra.mxu0 0.0
    %140 = vmatprep.subr.mxu0 0.0
    %141 = vmatpush2.msra.mxu0 0.0
    %142 = vmatprep.subr.mxu0 0.0
    %143 = vmatpush2.msra.mxu0 0.0
    %144 = vmatprep.subr.mxu0 0.0
    %145 = vmatpush2.msra.mxu0 0.0
    %146 = vmatprep.subr.mxu0 0.0
    %147 = vmatpush2.msra.mxu0 0.0
    %148 = vmatprep.mubr.f32.mxu0 0.0
    %149 = vmatmul.mubr.f32.gmra.mxu0 %v74
    %v150 = vpop.f32.mrf.mxu0
    %v151 = vadd.f32 %v63, %v150
    %v152 = vpop.f32.mrf.mxu0
    %v153 = vadd.f32 %v67, %v152
    %154 = vmatprep.mubr.f32.mxu0 0.0
    %155 = vmatmul.mubr.f32.gmra.mxu0 %v77
    %v156 = vpop.f32.mrf.mxu0
    %v157 = vadd.f32 %v63, %v156
    %v158 = vpop.f32.mrf.mxu0
    %v159 = vadd.f32 %v67, %v158
    %160 = vdwg.mxu0
    %v161 = vmax.f32 %v151, 0.0
    %v162 = vmax.f32 %v153, 0.0
    %v163 = vmax.f32 %v157, 0.0
    %v164 = vmax.f32 %v159, 0.0
    %v165 = vld [vmem:[#allocation2] sm:$0xff]
    %v166 = vld [vmem:[#allocation2 + $0x8] sm:$0xff]
    %v167 = vld [vmem:[#allocation2 + $0x10] sm:$0xff]
    %v168 = vld [vmem:[#allocation2 + $0x18] sm:$0xff]
    %v169 = vld [vmem:[#allocation2 + $0x20] sm:$0xff]
    %v170 = vld [vmem:[#allocation2 + $0x28] sm:$0xff]
    %v171 = vld [vmem:[#allocation2 + $0x30] sm:$0xff]
    %v172 = vld [vmem:[#allocation2 + $0x38] sm:$0xff]
    %v173 = vld [vmem:[#allocation2 + $0x40] sm:$0xff]
    %v174 = vld [vmem:[#allocation2 + $0x48] sm:$0xff]
    %v175 = vld [vmem:[#allocation2 + $0x50] sm:$0xff]
    %v176 = vld [vmem:[#allocation2 + $0x58] sm:$0xff]
    %v177 = vld [vmem:[#allocation2 + $0x60] sm:$0xff]
    %v178 = vld [vmem:[#allocation2 + $0x68] sm:$0xff]
    %v179 = vld [vmem:[#allocation2 + $0x70] sm:$0xff]
    %v180 = vld [vmem:[#allocation2 + $0x78] sm:$0xff]
    %v181 = vld [vmem:[#allocation2 + $0x80] sm:$0xff]
    %v182 = vld [vmem:[#allocation2 + $0x88] sm:$0xff]
    %v183 = vld [vmem:[#allocation2 + $0x90] sm:$0xff]
    %v184 = vld [vmem:[#allocation2 + $0x98] sm:$0xff]
    %v185 = vld [vmem:[#allocation2 + $0xa0] sm:$0xff]
    %v186 = vld [vmem:[#allocation2 + $0xa8] sm:$0xff]
    %v187 = vld [vmem:[#allocation2 + $0xb0] sm:$0xff]
    %v188 = vld [vmem:[#allocation2 + $0xb8] sm:$0xff]
    %v189 = vld [vmem:[#allocation2 + $0xc0] sm:$0xff]
    %v190 = vld [vmem:[#allocation2 + $0xc8] sm:$0xff]
    %v191 = vld [vmem:[#allocation2 + $0xd0] sm:$0xff]
    %v192 = vld [vmem:[#allocation2 + $0xd8] sm:$0xff]
    %v193 = vld [vmem:[#allocation2 + $0xe0] sm:$0xff]
    %v194 = vld [vmem:[#allocation2 + $0xe8] sm:$0xff]
    %v195 = vld [vmem:[#allocation2 + $0xf0] sm:$0xff]
    %v196 = vld [vmem:[#allocation2 + $0xf8] sm:$0xff]
    %v197 = vld [vmem:[#allocation2 + $0x100] sm:$0xff]
    %v198 = vld [vmem:[#allocation2 + $0x108] sm:$0xff]
    %v199 = vld [vmem:[#allocation2 + $0x110] sm:$0xff]
    %v200 = vld [vmem:[#allocation2 + $0x118] sm:$0xff]
    %v201 = vld [vmem:[#allocation2 + $0x120] sm:$0xff]
    %v202 = vld [vmem:[#allocation2 + $0x128] sm:$0xff]
    %v203 = vld [vmem:[#allocation2 + $0x130] sm:$0xff]
    %v204 = vld [vmem:[#allocation2 + $0x138] sm:$0xff]
    %v205 = vld [vmem:[#allocation2 + $0x140] sm:$0xff]
    %v206 = vld [vmem:[#allocation2 + $0x148] sm:$0xff]
    %v207 = vld [vmem:[#allocation2 + $0x150] sm:$0xff]
    %v208 = vld [vmem:[#allocation2 + $0x158] sm:$0xff]
    %v209 = vld [vmem:[#allocation2 + $0x160] sm:$0xf]
    %v210 = vld [vmem:[#allocation2 + $0x168] sm:$0xf]
    %v211 = vld [vmem:[%s4] sm:$0x3]
    %v213 = vlaneseq
    %v214 = vshrl.u32 %v213, 7
    %v215 = vsub.s32 0, %v214
    %v216 = vrot.slane %v211, %v215
    %v217 = vlaneseq
    %v218 = vshrl.u32 %v217, 7
    %v219 = vsub.s32 1, %v218
    %v220 = vrot.slane %v211, %v219
    %vm223 = vcmask 424960
    %v225 = vsel %vm223, %v162, 0
    %v228 = vsel %vm223, %v164, 0
    %v231 = vsel %vm79, %v209, 0
    %v234 = vsel %vm79, %v210, 0
    %236 = vmatprep.subr.mxu0 %v196
    %237 = vmatpush1.msra.mxu0 %v195
    %238 = vmatprep.subr.mxu0 %v194
    %239 = vmatpush1.msra.mxu0 %v193
    %240 = vmatprep.subr.mxu0 %v192
    %241 = vmatpush1.msra.mxu0 %v191
    %242 = vmatprep.subr.mxu0 %v190
    %243 = vmatpush1.msra.mxu0 %v189
    %244 = vmatprep.subr.mxu0 %v188
    %245 = vmatpush1.msra.mxu0 %v187
    %246 = vmatprep.subr.mxu0 %v186
    %247 = vmatpush1.msra.mxu0 %v185
    %248 = vmatprep.subr.mxu0 %v184
    %249 = vmatpush1.msra.mxu0 %v183
    %250 = vmatprep.subr.mxu0 %v182
    %251 = vmatpush1.msra.mxu0 %v181
    %252 = vmatprep.subr.mxu0 %v180
    %253 = vmatpush1.msra.mxu0 %v179
    %254 = vmatprep.subr.mxu0 %v178
    %255 = vmatpush1.msra.mxu0 %v177
    %256 = vmatprep.subr.mxu0 %v176
    %257 = vmatpush1.msra.mxu0 %v175
    %258 = vmatprep.subr.mxu0 %v174
    %259 = vmatpush1.msra.mxu0 %v173
    %260 = vmatprep.subr.mxu0 %v172
    %261 = vmatpush1.msra.mxu0 %v171
    %262 = vmatprep.subr.mxu0 %v170
    %263 = vmatpush1.msra.mxu0 %v169
    %264 = vmatprep.subr.mxu0 %v168
    %265 = vmatpush1.msra.mxu0 %v167
    %266 = vmatprep.subr.mxu0 %v166
    %267 = vmatpush1.msra.mxu0 %v165
    %268 = vmatprep.subr.mxu0 0.0
    %269 = vmatpush2.msra.mxu0 0.0
    %270 = vmatprep.subr.mxu0 0.0
    %271 = vmatpush2.msra.mxu0 0.0
    %272 = vmatprep.subr.mxu0 0.0
    %273 = vmatpush2.msra.mxu0 0.0
    %274 = vmatprep.subr.mxu0 0.0
    %275 = vmatpush2.msra.mxu0 0.0
    %276 = vmatprep.subr.mxu0 0.0
    %277 = vmatpush2.msra.mxu0 0.0
    %278 = vmatprep.subr.mxu0 0.0
    %279 = vmatpush2.msra.mxu0 0.0
    %280 = vmatprep.subr.mxu0 0.0
    %281 = vmatpush2.msra.mxu0 0.0
    %282 = vmatprep.subr.mxu0 0.0
    %283 = vmatpush2.msra.mxu0 0.0
    %284 = vmatprep.subr.mxu0 0.0
    %285 = vmatpush2.msra.mxu0 0.0
    %286 = vmatprep.subr.mxu0 %v234
    %287 = vmatpush2.msra.mxu0 %v231
    %288 = vmatprep.subr.mxu0 %v208
    %289 = vmatpush2.msra.mxu0 %v207
    %290 = vmatprep.subr.mxu0 %v206
    %291 = vmatpush2.msra.mxu0 %v205
    %292 = vmatprep.subr.mxu0 %v204
    %293 = vmatpush2.msra.mxu0 %v203
    %294 = vmatprep.subr.mxu0 %v202
    %295 = vmatpush2.msra.mxu0 %v201
    %296 = vmatprep.subr.mxu0 %v200
    %297 = vmatpush2.msra.mxu0 %v199
    %298 = vmatprep.subr.mxu0 %v198
    %299 = vmatpush2.msra.mxu0 %v197
    %300 = vmatprep.mubr.f32.mxu0 %v225
    %301 = vmatmul.mubr.f32.gmra.mxu0 %v161
    %v302 = vpop.f32.mrf.mxu0
    %v303 = vadd.f32 %v216, %v302
    %v304 = vpop.f32.mrf.mxu0
    %v305 = vadd.f32 %v220, %v304
    %306 = vmatprep.mubr.f32.mxu0 %v228
    %307 = vmatmul.mubr.f32.gmra.mxu0 %v163
    %v308 = vpop.f32.mrf.mxu0
    %v309 = vadd.f32 %v216, %v308
    %v310 = vpop.f32.mrf.mxu0
    %v311 = vadd.f32 %v220, %v310
    %312 = vdwg.mxu0
    %v313 = vmax.f32 %v303, 0.0
    %v314 = vmax.f32 %v305, 0.0
    %v315 = vmax.f32 %v309, 0.0
    %v316 = vmax.f32 %v311, 0.0
    %v317 = vld [vmem:[#allocation5] sm:$0xff]
    %v318 = vld [vmem:[#allocation5 + $0x8] sm:$0xff]
    %v319 = vld [vmem:[#allocation5 + $0x10] sm:$0xff]
    %v320 = vld [vmem:[#allocation5 + $0x18] sm:$0xff]
    %v321 = vld [vmem:[#allocation5 + $0x20] sm:$0xff]
    %v322 = vld [vmem:[#allocation5 + $0x28] sm:$0xff]
    %v323 = vld [vmem:[#allocation5 + $0x30] sm:$0xff]
    %v324 = vld [vmem:[#allocation5 + $0x38] sm:$0xff]
    %v325 = vld [vmem:[#allocation5 + $0x40] sm:$0xff]
    %v326 = vld [vmem:[#allocation5 + $0x48] sm:$0xff]
    %v327 = vld [vmem:[#allocation5 + $0x50] sm:$0xff]
    %v328 = vld [vmem:[#allocation5 + $0x58] sm:$0xff]
    %v329 = vld [vmem:[#allocation5 + $0x60] sm:$0xff]
    %v330 = vld [vmem:[#allocation5 + $0x68] sm:$0xff]
    %v331 = vld [vmem:[#allocation5 + $0x70] sm:$0xff]
    %v332 = vld [vmem:[#allocation5 + $0x78] sm:$0xff]
    %v333 = vld [vmem:[#allocation5 + $0x80] sm:$0xff]
    %v334 = vld [vmem:[#allocation5 + $0x88] sm:$0xff]
    %v335 = vld [vmem:[#allocation5 + $0x90] sm:$0xff]
    %v336 = vld [vmem:[#allocation5 + $0x98] sm:$0xff]
    %v337 = vld [vmem:[#allocation5 + $0xa0] sm:$0xff]
    %v338 = vld [vmem:[#allocation5 + $0xa8] sm:$0xff]
    %v339 = vld [vmem:[#allocation5 + $0xb0] sm:$0xff]
    %v340 = vld [vmem:[#allocation5 + $0xb8] sm:$0xff]
    %v341 = vld [vmem:[#allocation5 + $0xc0] sm:$0xff]
    %v342 = vld [vmem:[#allocation5 + $0xc8] sm:$0xff]
    %v343 = vld [vmem:[#allocation5 + $0xd0] sm:$0xff]
    %v344 = vld [vmem:[#allocation5 + $0xd8] sm:$0xff]
    %v345 = vld [vmem:[#allocation5 + $0xe0] sm:$0xff]
    %v346 = vld [vmem:[#allocation5 + $0xe8] sm:$0xff]
    %v347 = vld [vmem:[#allocation5 + $0xf0] sm:$0xff]
    %v348 = vld [vmem:[#allocation5 + $0xf8] sm:$0xff]
    %v349 = vld [vmem:[#allocation5 + $0x100] sm:$0xff]
    %v350 = vld [vmem:[#allocation5 + $0x108] sm:$0xff]
    %v351 = vld [vmem:[#allocation5 + $0x110] sm:$0xff]
    %v352 = vld [vmem:[#allocation5 + $0x118] sm:$0xff]
    %v353 = vld [vmem:[#allocation5 + $0x120] sm:$0xff]
    %v354 = vld [vmem:[#allocation5 + $0x128] sm:$0xff]
    %v355 = vld [vmem:[#allocation5 + $0x130] sm:$0xff]
    %v356 = vld [vmem:[#allocation5 + $0x138] sm:$0xff]
    %v357 = vld [vmem:[#allocation5 + $0x140] sm:$0xff]
    %v358 = vld [vmem:[#allocation5 + $0x148] sm:$0xff]
    %v359 = vld [vmem:[#allocation5 + $0x150] sm:$0xff]
    %v360 = vld [vmem:[#allocation5 + $0x158] sm:$0xff]
    %v361 = vld [vmem:[#allocation5 + $0x160] sm:$0xf]
    %v362 = vld [vmem:[#allocation5 + $0x168] sm:$0xf]
    %v363 = vld [vmem:[%s6] sm:$0x3]
    %v365 = vlaneseq
    %v366 = vshrl.u32 %v365, 7
    %v367 = vsub.s32 0, %v366
    %v368 = vrot.slane %v363, %v367
    %v369 = vlaneseq
    %v370 = vshrl.u32 %v369, 7
    %v371 = vsub.s32 1, %v370
    %v372 = vrot.slane %v363, %v371
    %v376 = vsel %vm223, %v314, 0
    %v379 = vsel %vm223, %v316, 0
    %v382 = vsel %vm79, %v361, 0
    %v385 = vsel %vm79, %v362, 0
    %387 = vmatprep.subr.mxu0 %v348
    %388 = vmatpush1.msra.mxu0 %v347
    %389 = vmatprep.subr.mxu0 %v346
    %390 = vmatpush1.msra.mxu0 %v345
    %391 = vmatprep.subr.mxu0 %v344
    %392 = vmatpush1.msra.mxu0 %v343
    %393 = vmatprep.subr.mxu0 %v342
    %394 = vmatpush1.msra.mxu0 %v341
    %395 = vmatprep.subr.mxu0 %v340
    %396 = vmatpush1.msra.mxu0 %v339
    %397 = vmatprep.subr.mxu0 %v338
    %398 = vmatpush1.msra.mxu0 %v337
    %399 = vmatprep.subr.mxu0 %v336
    %400 = vmatpush1.msra.mxu0 %v335
    %401 = vmatprep.subr.mxu0 %v334
    %402 = vmatpush1.msra.mxu0 %v333
    %403 = vmatprep.subr.mxu0 %v332
    %404 = vmatpush1.msra.mxu0 %v331
    %405 = vmatprep.subr.mxu0 %v330
    %406 = vmatpush1.msra.mxu0 %v329
    %407 = vmatprep.subr.mxu0 %v328
    %408 = vmatpush1.msra.mxu0 %v327
    %409 = vmatprep.subr.mxu0 %v326
    %410 = vmatpush1.msra.mxu0 %v325
    %411 = vmatprep.subr.mxu0 %v324
    %412 = vmatpush1.msra.mxu0 %v323
    %413 = vmatprep.subr.mxu0 %v322
    %414 = vmatpush1.msra.mxu0 %v321
    %415 = vmatprep.subr.mxu0 %v320
    %416 = vmatpush1.msra.mxu0 %v319
    %417 = vmatprep.subr.mxu0 %v318
    %418 = vmatpush1.msra.mxu0 %v317
    %419 = vmatprep.subr.mxu0 0.0
    %420 = vmatpush2.msra.mxu0 0.0
    %421 = vmatprep.subr.mxu0 0.0
    %422 = vmatpush2.msra.mxu0 0.0
    %423 = vmatprep.subr.mxu0 0.0
    %424 = vmatpush2.msra.mxu0 0.0
    %425 = vmatprep.subr.mxu0 0.0
    %426 = vmatpush2.msra.mxu0 0.0
    %427 = vmatprep.subr.mxu0 0.0
    %428 = vmatpush2.msra.mxu0 0.0
    %429 = vmatprep.subr.mxu0 0.0
    %430 = vmatpush2.msra.mxu0 0.0
    %431 = vmatprep.subr.mxu0 0.0
    %432 = vmatpush2.msra.mxu0 0.0
    %433 = vmatprep.subr.mxu0 0.0
    %434 = vmatpush2.msra.mxu0 0.0
    %435 = vmatprep.subr.mxu0 0.0
    %436 = vmatpush2.msra.mxu0 0.0
    %437 = vmatprep.subr.mxu0 %v385
    %438 = vmatpush2.msra.mxu0 %v382
    %439 = vmatprep.subr.mxu0 %v360
    %440 = vmatpush2.msra.mxu0 %v359
    %441 = vmatprep.subr.mxu0 %v358
    %442 = vmatpush2.msra.mxu0 %v357
    %443 = vmatprep.subr.mxu0 %v356
    %444 = vmatpush2.msra.mxu0 %v355
    %445 = vmatprep.subr.mxu0 %v354
    %446 = vmatpush2.msra.mxu0 %v353
    %447 = vmatprep.subr.mxu0 %v352
    %448 = vmatpush2.msra.mxu0 %v351
    %449 = vmatprep.subr.mxu0 %v350
    %450 = vmatpush2.msra.mxu0 %v349
    %451 = vmatprep.mubr.f32.mxu0 %v376
    %452 = vmatmul.mubr.f32.gmra.mxu0 %v313
    %v453 = vpop.f32.mrf.mxu0
    %v454 = vadd.f32 %v368, %v453
    %v455 = vpop.f32.mrf.mxu0
    %v456 = vadd.f32 %v372, %v455
    %457 = vmatprep.mubr.f32.mxu0 %v379
    %458 = vmatmul.mubr.f32.gmra.mxu0 %v315
    %v459 = vpop.f32.mrf.mxu0
    %v460 = vadd.f32 %v368, %v459
    %v461 = vpop.f32.mrf.mxu0
    %v462 = vadd.f32 %v372, %v461
    %463 = vdwg.mxu0
    %v464 = vmax.f32 %v454, 0.0
    %v465 = vmax.f32 %v456, 0.0
    %v466 = vmax.f32 %v460, 0.0
    %v467 = vmax.f32 %v462, 0.0
    %468 = vst [vmem:[#allocation7] sm:$0xff] %v464
    %469 = vst.msk [vmem:[#allocation7 + $0x8] sm:$0xff] %vm223, %v465
    %470 = vst [vmem:[#allocation7 + $0x10] sm:$0xff] %v466
    %471 = vst.msk [vmem:[#allocation7 + $0x18] sm:$0xff] %vm223, %v467
    // Predicated region
    $region38: #{group1dcnn_forward_batched.1} parent=1 // pred_check
      _
    $region39: #{group1dcnn_forward_batched.1} parent=1 // pred_check_branch
      %473 = sbr.rel (0) target = $region41
    $region40: #{group1dcnn_forward_batched.1} parent=1 // pred_region
      %s475 = ssub.s32 512, 512
      %476 = vsyncadd [#allocation4], %s475
      %s477 = sshll.u32 [#allocation7], 4
      %s478 = int_to_ptr.vmem [resolvable:$true] %s477
      %483 = dma.vmem_to_hbm [thread:$0]  %s478, 512, %s7, [#allocation4], 256, 256, 16
    $region41: #{group1dcnn_forward_batched.1} parent=1 // pred_fallthru
      _
    // Predicated region
    $region42: #{group1dcnn_forward_batched.1} parent=1 // pred_check
      _
    $region43: #{group1dcnn_forward_batched.1} parent=1 // pred_check_branch
      %485 = sbr.rel (0) target = $region45
    $region44: #{group1dcnn_forward_batched.1} parent=1 // pred_region
      %486 = dma.done [#allocation4], 512
    $region45: #{group1dcnn_forward_batched.1} parent=1 // pred_fallthru
      _
    %487 = vsyncpa [#allocation3], 1
    %488 = vsyncpa [#allocation6], 1
    %489 = vsyncpa [#allocation4], 1

</llo_original>
